<compile_context>
chip_gen: v7x
topology: tpu7x:2x2x1
jax: 0.10.0
libtpu: 0.0.40
codegen_flags: <defaults>
</compile_context>

<pallas_src>
import functools

import jax
import jax.numpy as jnp
from jax.experimental import pallas as pl
from jax.experimental.pallas import tpu as pltpu

LN_EPS = 1e-5          # torch nn.LayerNorm default
OUT_LANES = 128        # lane-dense output slab: q1 -> lane 0, q2 -> lane 1
K_TILE = 2048          # repr_dim chunk streamed per grid step


def _round_up(x, m):
    return ((x + m - 1) // m) * m


# ----------------------------------------------------------------------------- kernel
def _critic_kernel(obs_ref, act_ref,
                   tw_ref, taff_ref,
                   w1h_ref, w1a_ref, b1_ref,
                   w2_ref, b2_ref,
                   w3_ref, b3_ref,
                   q_ref, acc_ref, *, r_total):
    k = pl.program_id(1)
    nk = pl.num_programs(1)
    cdt = tw_ref.dtype                        # MXU operand dtype (bf16)

    obs = obs_ref[...]
    if r_total is not None:                   # static: padded K tail -> mask OOB columns
        tk = obs.shape[1]
        start = k * tk
        col = jax.lax.broadcasted_iota(jnp.int32, obs.shape, 1)
        valid = jnp.clip(r_total - start, 0, tk)
        obs = jnp.where(col < valid, obs, jnp.zeros_like(obs))

    # ---- trunk matmul, accumulated over K chunks in f32.
    part = jnp.dot(obs.astype(cdt), tw_ref[...], preferred_element_type=jnp.float32)

    @pl.when(k == 0)
    def _():
        acc_ref[...] = part

    @pl.when(k > 0)
    def _():
        acc_ref[...] = acc_ref[...] + part

    # ---- epilogue on the last K chunk: LayerNorm -> Tanh -> both fused Q heads.
    @pl.when(k == nk - 1)
    def _():
        H = w2_ref.shape[-1]                                       # padded hidden width
        x = acc_ref[...] + taff_ref[0:1, :]                        # trunk bias
        mean = jnp.mean(x, axis=-1, keepdims=True)
        var = jnp.mean((x - mean) ** 2, axis=-1, keepdims=True)
        h = jnp.tanh((x - mean) * jax.lax.rsqrt(var + LN_EPS)
                     * taff_ref[1:2, :] + taff_ref[2:3, :])        # LN gamma / beta

        act = act_ref[...]
        # layer 1, both heads fused along N: concat([h, a]) @ W1 == h@W1h + a@W1a
        z1 = jnp.maximum(
            jnp.dot(h.astype(cdt), w1h_ref[...], preferred_element_type=jnp.float32)
            + jnp.dot(act.astype(cdt), w1a_ref[...], preferred_element_type=jnp.float32)
            + b1_ref[...], 0.0)                                    # (TB, 2Hp)

        # layer 2: two dense (Hp, Hp) matmuls; Hp % 128 == 0 -> clean lane split.
        z2_1 = jnp.maximum(
            jnp.dot(z1[:, :H].astype(cdt), w2_ref[0], preferred_element_type=jnp.float32)
            + b2_ref[0], 0.0)
        z2_2 = jnp.maximum(
            jnp.dot(z1[:, H:].astype(cdt), w2_ref[1], preferred_element_type=jnp.float32)
            + b2_ref[1], 0.0)

        # layer 3: both heads packed into one lane-dense (TB, 128) slab.
        q_ref[...] = (jnp.dot(z2_1.astype(cdt), w3_ref[0], preferred_element_type=jnp.float32)
                      + jnp.dot(z2_2.astype(cdt), w3_ref[1], preferred_element_type=jnp.float32)
                      + b3_ref[...])


# ----------------------------------------------------------------------------- params
def make_critic_params(key, repr_dim, action_dim, feature_dim, hidden_dim):
    """Synthetic f32 parameters with the PyTorch module's layout ((in, out) weights)."""
    ks = jax.random.split(key, 14)

    def lin(kw, kb, fi, fo, scale=0.1):
        return (scale * jax.random.normal(kw, (fi, fo), jnp.float32),
                scale * jax.random.normal(kb, (fo,), jnp.float32))

    p = {}
    p["trunk_w"], p["trunk_b"] = lin(ks[0], ks[1], repr_dim, feature_dim)
    p["ln_g"] = jnp.ones((feature_dim,), jnp.float32)
    p["ln_b"] = jnp.zeros((feature_dim,), jnp.float32)
    in1 = feature_dim + action_dim
    for name, off in (("q1", 2), ("q2", 8)):
        p[f"{name}_w1"], p[f"{name}_b1"] = lin(ks[off + 0], ks[off + 1], in1, hidden_dim)
        p[f"{name}_w2"], p[f"{name}_b2"] = lin(ks[off + 2], ks[off + 3], hidden_dim, hidden_dim)
        p[f"{name}_w3"], p[f"{name}_b3"] = lin(ks[off + 4], ks[off + 5], hidden_dim, 1)
    return p


def pack_critic_params(p, weight_dtype=jnp.bfloat16):
    """Pack / pad / quantize parameters into the kernel's 9 consolidated arrays.

    * hidden width padded to a multiple of 128 (padded units are exact zeros,
      so ReLU(0)=0 and zero downstream weights keep semantics identical);
    * trunk weight rows padded to a multiple of K_TILE when repr_dim > K_TILE
      (zero rows, matched by the in-kernel obs tail mask).
    """
    R, F = p["trunk_w"].shape
    H = p["q1_w2"].shape[0]
    Hp = _round_up(H, 128)
    Rp = _round_up(R, K_TILE) if R > K_TILE else R

    def pad_h(w):           # pad hidden (output) axis of an (in, H) weight
        return jnp.pad(w, ((0, 0), (0, Hp - H)))

    kp = {}
    tw = p["trunk_w"]
    if Rp != R:
        tw = jnp.pad(tw, ((0, Rp - R), (0, 0)))
    kp["tw"] = tw.astype(weight_dtype)                                        # (Rp, F)
    kp["taff"] = jnp.stack([p["trunk_b"], p["ln_g"], p["ln_b"]], axis=0)      # (3, F)   f32
    kp["w1h"] = jnp.concatenate([pad_h(p["q1_w1"][:F]), pad_h(p["q2_w1"][:F])],
                                axis=1).astype(weight_dtype)                  # (F, 2Hp)
    kp["w1a"] = jnp.concatenate([pad_h(p["q1_w1"][F:]), pad_h(p["q2_w1"][F:])],
                                axis=1).astype(weight_dtype)                  # (A, 2Hp)
    kp["b1"] = jnp.concatenate([jnp.pad(p["q1_b1"], (0, Hp - H)),
                                jnp.pad(p["q2_b1"], (0, Hp - H))])[None, :]   # (1, 2Hp) f32
    kp["w2"] = jnp.stack([jnp.pad(p["q1_w2"], ((0, Hp - H), (0, Hp - H))),
                          jnp.pad(p["q2_w2"], ((0, Hp - H), (0, Hp - H)))],
                         axis=0).astype(weight_dtype)                         # (2, Hp, Hp)
    kp["b2"] = jnp.stack([jnp.pad(p["q1_b2"], (0, Hp - H))[None, :],
                          jnp.pad(p["q2_b2"], (0, Hp - H))[None, :]], axis=0) # (2, 1, Hp) f32
    w3 = jnp.zeros((2, Hp, OUT_LANES), jnp.float32)
    w3 = w3.at[0, :H, 0].set(p["q1_w3"][:, 0]).at[1, :H, 1].set(p["q2_w3"][:, 0])
    kp["w3"] = w3.astype(weight_dtype)                                        # (2, Hp, 128)
    b3 = jnp.zeros((1, OUT_LANES), jnp.float32)
    b3 = b3.at[0, 0].set(p["q1_b3"][0]).at[0, 1].set(p["q2_b3"][0])
    kp["b3"] = b3                                                             # (1, 128)   f32
    return kp


def _weight_args(kp):
    return (kp["tw"], kp["taff"], kp["w1h"], kp["w1a"], kp["b1"],
            kp["w2"], kp["b2"], kp["w3"], kp["b3"])


# ----------------------------------------------------------------------------- hw config
@functools.lru_cache(maxsize=1)
def _device_config():
    try:
        kind = jax.devices()[0].device_kind.lower()
    except Exception:
        kind = ""
    if "v7" in kind:
        gen = "v7x"
    elif "v6" in kind:
        gen = "v6e"
    elif "v5 lite" in kind or "v5lite" in kind or "v5e" in kind:
        gen = "v5e"
    else:
        gen = "other"
    try:
        vmem_cap = int(pltpu.get_tpu_info().vmem_capacity_bytes)
    except Exception:
        vmem_cap = (64 << 20) if gen in ("v7x", "other") else (128 << 20)
    mxu_rows = 128 if gen == "v5e" else 256     # native MXU tile for M rounding
    n_cores = 2 if gen == "v7x" else 1          # TCs sharing the "parallel" grid axis
    return gen, vmem_cap, mxu_rows, n_cores


_PM_SUPPORTED = None


def _pipeline_mode_supported():
    """Probe whether pl.BlockSpec(pipeline_mode=pl.Buffered(n)) works; fall back if not."""
    global _PM_SUPPORTED
    if _PM_SUPPORTED is None:
        try:
            def k(a_ref, b_ref, o_ref):
                o_ref[...] = a_ref[...] + b_ref[...]
            x = jnp.ones((32, 128), jnp.float32)
            w = jnp.ones((8, 128), jnp.float32)
            f = pl.pallas_call(
                k, grid=(4,),
                in_specs=[pl.BlockSpec((8, 128), lambda i: (i, 0),
                                       pipeline_mode=pl.Buffered(3)),
                          pl.BlockSpec((8, 128), lambda i: (0, 0),
                                       pipeline_mode=pl.Buffered(1))],
                out_specs=pl.BlockSpec((8, 128), lambda i: (i, 0)),
                out_shape=jax.ShapeDtypeStruct((32, 128), jnp.float32))
            jax.block_until_ready(f(x, w))
            _PM_SUPPORTED = True
        except Exception:
            _PM_SUPPORTED = False
    return _PM_SUPPORTED


def _plan(B, R, obs_itemsize, act_itemsize, F, A, resident_weight_bytes):
    """Generation-aware (tb, tk, vmem_limit) selection."""
    gen, vmem_cap, mxu_rows, n_cores = _device_config()
    budget = (vmem_cap * 3) // 4                  # leave compiler scratch headroom (esp. v7x)

    tk = K_TILE if R > K_TILE else R              # K chunk keeps tb large for any repr_dim

    tb_cap = 512 if gen in ("v5e", "v6e") else 256
    if B >= 8:
        tb = min(tb_cap, (B // 8) * 8)
        if tb >= mxu_rows:
            tb = (tb // mxu_rows) * mxu_rows      # match native MXU tile
    else:
        tb = B                                    # block == full dim (allowed)

    # Make sure both TensorCores get work on multi-core parts.
    if n_cores >= 2 and tb >= 16 and -(-B // tb) < n_cores:
        tb = max(8, _round_up(-(-tb // n_cores), 8))
        if B >= 8:
            tb = min(tb, (B // 8) * 8)

    def vmem_need(tb_):
        return (3 * tb_ * tk * obs_itemsize       # obs stream (<= 3 buffers)
                + 2 * tk * F * 2                  # trunk-weight stream (bf16)
                + 2 * tb_ * A * act_itemsize      # action
                + 2 * tb_ * OUT_LANES * 4         # output
                + tb_ * F * 4                     # f32 accumulator scratch
                + 2 * resident_weight_bytes)      # resident weights (<= 2 buffers)

    while vmem_need(tb) > budget and tb > 8:
        tb = max(8, ((tb // 2) // 8) * 8)

    vmem_limit = int(min(budget, max(2 * vmem_need(tb), 32 << 20)))
    return tb, tk, vmem_limit


# ----------------------------------------------------------------------------- wrapper
@functools.partial(jax.jit, static_argnames=("tb", "tk", "vmem_limit", "use_pm"))
def _critic_forward_impl(obs, action, kp, *, tb, tk, vmem_limit, use_pm):
    B, R = obs.shape
    A = action.shape[1]
    F = kp["taff"].shape[1]
    Hp = kp["w2"].shape[-1]
    Rp = kp["tw"].shape[0]

    nb = -(-B // tb)
    nk = Rp // tk
    r_total = R if nk * tk != R else None         # mask obs tail only when K is padded

    weights = _weight_args(kp)

    def spec(shape, index_map, buffers=None):
        if use_pm and buffers is not None:
            return pl.BlockSpec(shape, index_map, pipeline_mode=pl.Buffered(buffers))
        return pl.BlockSpec(shape, index_map)

    obs_buffers = 3 if (nb * nk) >= 3 else None
    in_specs = [
        spec((tb, tk), lambda i, k: (i, k), obs_buffers),    # obs    (batch & K streamed)
        spec((tb, A), lambda i, k: (i, 0)),                  # action (batch streamed)
        spec((tk, F), lambda i, k: (k, 0)),                  # trunk weight (K streamed)
    ] + [
        spec(w.shape, (lambda nd: (lambda i, k: (0,) * nd))(w.ndim), 1)  # resident weights
        for w in weights[1:]
    ]
    out_spec = spec((tb, OUT_LANES), lambda i, k: (i, 0))

    flops = 2 * B * (R * F + (F + A) * 2 * Hp + 2 * Hp * Hp + 2 * Hp * OUT_LANES)
    w_bytes = sum(int(w.size) * w.dtype.itemsize for w in weights)
    tw_bytes = int(kp["tw"].size) * kp["tw"].dtype.itemsize
    bytes_accessed = int(obs.size * obs.dtype.itemsize
                         + action.size * action.dtype.itemsize
                         + w_bytes + max(nb - 1, 0) * tw_bytes
                         + B * OUT_LANES * 4)

    q = pl.pallas_call(
        functools.partial(_critic_kernel, r_total=r_total),
        grid=(nb, nk),
        in_specs=in_specs,
        out_specs=out_spec,
        out_shape=jax.ShapeDtypeStruct((B, OUT_LANES), jnp.float32),
        scratch_shapes=[pltpu.VMEM((tb, F), jnp.float32)],
        compiler_params=pltpu.CompilerParams(
            dimension_semantics=("parallel", "arbitrary"),
            vmem_limit_bytes=vmem_limit),
        cost_estimate=pl.CostEstimate(
            flops=flops,
            transcendentals=B * (F + 1),
            bytes_accessed=bytes_accessed),
    )(obs, action, *weights)

    return q[:, 0:1], q[:, 1:2]


def critic_forward(obs, action, kp):
    """DrQ-v2 Critic forward. obs/action may be f32 or bf16. Returns (q1, q2), each (B,1) f32."""
    B, R = obs.shape
    A = action.shape[1]
    F = kp["taff"].shape[1]
    expected_rp = _round_up(R, K_TILE) if R > K_TILE else R
    if kp["tw"].shape[0] != expected_rp:
        raise ValueError("packed trunk weight does not match obs repr_dim")
    resident_bytes = sum(int(a.size) * a.dtype.itemsize for a in _weight_args(kp)[1:])
    tb, tk, vmem_limit = _plan(B, R, obs.dtype.itemsize, action.dtype.itemsize,
                               F, A, resident_bytes)
    use_pm = _pipeline_mode_supported()
    return _critic_forward_impl(obs, action, kp, tb=tb, tk=tk,
                                vmem_limit=vmem_limit, use_pm=use_pm)


# ----------------------------------------------------------------------------- references
def critic_forward_ref(obs, action, p):
    """Pure-JAX full-f32 reference matching the PyTorch module semantics."""
    x = obs @ p["trunk_w"] + p["trunk_b"]
    mean = jnp.mean(x, -1, keepdims=True)
    var = jnp.mean((x - mean) ** 2, -1, keepdims=True)
    h = jnp.tanh((x - mean) / jnp.sqrt(var + LN_EPS) * p["ln_g"] + p["ln_b"])
    ha = jnp.concatenate([h, action.astype(jnp.float32)], axis=-1)

    def head(n):
        z1 = jnp.maximum(ha @ p[f"{n}_w1"] + p[f"{n}_b1"], 0.0)
        z2 = jnp.maximum(z1 @ p[f"{n}_w2"] + p[f"{n}_b2"], 0.0)
        return z2 @ p[f"{n}_w3"] + p[f"{n}_b3"]

    return head("q1"), head("q2")


def critic_forward_packed_ref(obs, action, kp):
    """Pure-JAX reference with the kernel's numerics (bf16 MXU operands, f32 LN)."""
    Hp = kp["w2"].shape[-1]
    cdt = kp["tw"].dtype
    R = obs.shape[1]
    x = jnp.dot(obs.astype(cdt), kp["tw"][:R],
                preferred_element_type=jnp.float32) + kp["taff"][0:1]
    mean = jnp.mean(x, -1, keepdims=True)
    var = jnp.mean((x - mean) ** 2, -1, keepdims=True)
    h = jnp.tanh((x - mean) * jax.lax.rsqrt(var + LN_EPS) * kp["taff"][1:2] + kp["taff"][2:3])
    z1 = jnp.maximum(
        jnp.dot(h.astype(cdt), kp["w1h"], preferred_element_type=jnp.float32)
        + jnp.dot(action.astype(cdt), kp["w1a"], preferred_element_type=jnp.float32)
        + kp["b1"], 0.0)
    z2_1 = jnp.maximum(jnp.dot(z1[:, :Hp].astype(cdt), kp["w2"][0],
                               preferred_element_type=jnp.float32) + kp["b2"][0], 0.0)
    z2_2 = jnp.maximum(jnp.dot(z1[:, Hp:].astype(cdt), kp["w2"][1],
                               preferred_element_type=jnp.float32) + kp["b2"][1], 0.0)
    q = (jnp.dot(z2_1.astype(cdt), kp["w3"][0], preferred_element_type=jnp.float32)
         + jnp.dot(z2_2.astype(cdt), kp["w3"][1], preferred_element_type=jnp.float32)
         + kp["b3"])
    return q[:, 0:1], q[:, 1:2]


# ----------------------------------------------------------------------------- test
if __name__ == "__main__":
    key = jax.random.PRNGKey(0)

    # ---- config 1: tiny shapes, single K chunk; f32 and bf16 streaming paths.
    B, repr_dim, action_dim, feature_dim, hidden_dim = 8, 64, 8, 32, 32
    k_obs, k_act, k_par, k2 = jax.random.split(key, 4)
    obs = jax.random.normal(k_obs, (B, repr_dim), jnp.float32)
    action = jax.random.normal(k_act, (B, action_dim), jnp.float32)
    params = make_critic_params(k_par, repr_dim, action_dim, feature_dim, hidden_dim)
    kparams = pack_critic_params(params)

    q1, q2 = critic_forward(obs, action, kparams)
    jax.block_until_ready((q1, q2))
    assert q1.shape == (B, 1) and q2.shape == (B, 1)

    # Tight check vs a pure-JAX reference with identical numerics.
    q1_p, q2_p = critic_forward_packed_ref(obs, action, kparams)
    assert jnp.allclose(q1, q1_p, atol=1e-4, rtol=1e-4)
    assert jnp.allclose(q2, q2_p, atol=1e-4, rtol=1e-4)

    # Loose check vs the full-f32 module semantics (bf16 weight quantization noise).
    q1_f, q2_f = critic_forward_ref(obs, action, params)
    assert jnp.allclose(q1, q1_f, atol=3e-2, rtol=3e-2)
    assert jnp.allclose(q2, q2_f, atol=3e-2, rtol=3e-2)

    # bf16 obs/action streaming path (halves HBM traffic on the DMA-bound trunk).
    obs_bf, act_bf = obs.astype(jnp.bfloat16), action.astype(jnp.bfloat16)
    q1_b, q2_b = critic_forward(obs_bf, act_bf, kparams)
    jax.block_until_ready((q1_b, q2_b))
    q1_bp, q2_bp = critic_forward_packed_ref(obs_bf, act_bf, kparams)
    assert jnp.allclose(q1_b, q1_bp, atol=1e-4, rtol=1e-4)
    assert jnp.allclose(q2_b, q2_bp, atol=1e-4, rtol=1e-4)

    # ---- config 2: wide repr_dim (multiple K chunks + masked tail) and ragged batch tiles.
    B2, R2, A2, F2, H2 = 20, 2 * K_TILE + 100, 6, 40, 32
    k_obs2, k_act2, k_par2 = jax.random.split(k2, 3)
    obs2 = jax.random.normal(k_obs2, (B2, R2), jnp.float32)
    act2 = jax.random.normal(k_act2, (B2, A2), jnp.float32)
    params2 = make_critic_params(k_par2, R2, A2, F2, H2)
    kparams2 = pack_critic_params(params2)

    q1_2, q2_2 = critic_forward(obs2, act2, kparams2)
    jax.block_until_ready((q1_2, q2_2))
    q1_2p, q2_2p = critic_forward_packed_ref(obs2, act2, kparams2)
    assert jnp.allclose(q1_2, q1_2p, atol=2e-3, rtol=2e-3)
    assert jnp.allclose(q2_2, q2_2p, atol=2e-3, rtol=2e-3)

    print("KERNEL_OK")
</pallas_src>

<mosaic_0001>
module attributes {stable_mosaic.version = 11 : i64} {
  func.func @_critic_kernel(%arg0: i32, %arg1: i32, %arg2: memref<8x64xf32, #tpu.memory_space<vmem>>, %arg3: memref<8x8xf32, #tpu.memory_space<vmem>>, %arg4: memref<64x32xbf16, #tpu.memory_space<vmem>>, %arg5: memref<3x32xf32, #tpu.memory_space<vmem>>, %arg6: memref<32x256xbf16, #tpu.memory_space<vmem>>, %arg7: memref<8x256xbf16, #tpu.memory_space<vmem>>, %arg8: memref<1x256xf32, #tpu.memory_space<vmem>>, %arg9: memref<2x128x128xbf16, #tpu.memory_space<vmem>>, %arg10: memref<2x1x128xf32, #tpu.memory_space<vmem>>, %arg11: memref<2x128x128xbf16, #tpu.memory_space<vmem>>, %arg12: memref<1x128xf32, #tpu.memory_space<vmem>>, %arg13: memref<8x128xf32, #tpu.memory_space<vmem>>, %arg14: memref<8x32xf32, #tpu.memory_space<vmem>>) attributes {dimension_semantics = [#tpu.dimension_semantics<parallel>, #tpu.dimension_semantics<arbitrary>], iteration_bounds = array<i64: 1, 1>, scalar_prefetch = 0 : i64, scratch_operands = 1 : i64, tpu.core_type = #tpu.core_type<tc>, window_params = [{transform_indices = @transform_0, window_bounds = array<i64: 8, 64>}, {transform_indices = @transform_1, window_bounds = array<i64: 8, 8>}, {transform_indices = @transform_2, window_bounds = array<i64: 64, 32>}, {pipeline_mode = #tpu.pipeline_mode<synchronous>, transform_indices = @transform_3, window_bounds = array<i64: 3, 32>}, {pipeline_mode = #tpu.pipeline_mode<synchronous>, transform_indices = @transform_4, window_bounds = array<i64: 32, 256>}, {pipeline_mode = #tpu.pipeline_mode<synchronous>, transform_indices = @transform_5, window_bounds = array<i64: 8, 256>}, {pipeline_mode = #tpu.pipeline_mode<synchronous>, transform_indices = @transform_6, window_bounds = array<i64: 1, 256>}, {pipeline_mode = #tpu.pipeline_mode<synchronous>, transform_indices = @transform_7, window_bounds = array<i64: 2, 128, 128>}, {pipeline_mode = #tpu.pipeline_mode<synchronous>, transform_indices = @transform_8, window_bounds = array<i64: 2, 1, 128>}, {pipeline_mode = #tpu.pipeline_mode<synchronous>, transform_indices = @transform_9, window_bounds = array<i64: 2, 128, 128>}, {pipeline_mode = #tpu.pipeline_mode<synchronous>, transform_indices = @transform_10, window_bounds = array<i64: 1, 128>}, {transform_indices = @transform_11, window_bounds = array<i64: 8, 128>}]} {
    %c0 = arith.constant 0 : index
    %c0_0 = arith.constant 0 : index
    %0 = vector.load %arg2[%c0, %c0_0] : memref<8x64xf32, #tpu.memory_space<vmem>>, vector<8x64xf32>
    %1 = arith.truncf %0 : vector<8x64xf32> to vector<8x64xbf16>
    %c0_1 = arith.constant 0 : index
    %c0_2 = arith.constant 0 : index
    %2 = vector.load %arg4[%c0_1, %c0_2] : memref<64x32xbf16, #tpu.memory_space<vmem>>, vector<64x32xbf16>
    %cst = arith.constant dense<0.000000e+00> : vector<8x32xf32>
    %3 = tpu.matmul %1, %2, %cst {dimension_numbers = #tpu.dot_dimension_numbers<[1], [0], [0], [1], [0, 0, 1, 1], [], []>} : vector<8x64xbf16>, vector<64x32xbf16>, vector<8x32xf32> -> vector<8x32xf32>
    %c0_i32 = arith.constant 0 : i32
    %4 = arith.cmpi eq, %arg1, %c0_i32 : i32
    %5 = arith.extui %4 : i1 to i32
    %c0_i32_3 = arith.constant 0 : i32
    %6 = arith.cmpi ne, %5, %c0_i32_3 : i32
    scf.if %6 {
      %c0_8 = arith.constant 0 : index
      %c0_9 = arith.constant 0 : index
      %13 = vector.load %arg14[%c0_8, %c0_9] : memref<8x32xf32, #tpu.memory_space<vmem>>, vector<8x32xf32>
      tpu.vector_store %arg14[%c0_8, %c0_9], %3 {strides = array<i32>} : memref<8x32xf32, #tpu.memory_space<vmem>>, vector<8x32xf32>,
    } else {
    }
    %c0_i32_4 = arith.constant 0 : i32
    %7 = arith.cmpi sgt, %arg1, %c0_i32_4 : i32
    %8 = arith.extui %7 : i1 to i32
    %c0_i32_5 = arith.constant 0 : i32
    %9 = arith.cmpi ne, %8, %c0_i32_5 : i32
    scf.if %9 {
      %c0_8 = arith.constant 0 : index
      %c0_9 = arith.constant 0 : index
      %13 = vector.load %arg14[%c0_8, %c0_9] : memref<8x32xf32, #tpu.memory_space<vmem>>, vector<8x32xf32>
      %14 = arith.addf %13, %3 : vector<8x32xf32>
      %c0_10 = arith.constant 0 : index
      %c0_11 = arith.constant 0 : index
      %15 = vector.load %arg14[%c0_10, %c0_11] : memref<8x32xf32, #tpu.memory_space<vmem>>, vector<8x32xf32>
      tpu.vector_store %arg14[%c0_10, %c0_11], %14 {strides = array<i32>} : memref<8x32xf32, #tpu.memory_space<vmem>>, vector<8x32xf32>,
    } else {
    }
    %c0_i32_6 = arith.constant 0 : i32
    %10 = arith.cmpi eq, %arg1, %c0_i32_6 : i32
    %11 = arith.extui %10 : i1 to i32
    %c0_i32_7 = arith.constant 0 : i32
    %12 = arith.cmpi ne, %11, %c0_i32_7 : i32
    scf.if %12 {
      %c0_8 = arith.constant 0 : index
      %c0_9 = arith.constant 0 : index
      %13 = vector.load %arg14[%c0_8, %c0_9] : memref<8x32xf32, #tpu.memory_space<vmem>>, vector<8x32xf32>
      %c0_10 = arith.constant 0 : index
      %c0_11 = arith.constant 0 : index
      %14 = vector.load %arg5[%c0_10, %c0_11] : memref<3x32xf32, #tpu.memory_space<vmem>>, vector<1x32xf32>
      %15 = vector.broadcast %14 : vector<1x32xf32> to vector<8x32xf32>
      %16 = arith.addf %13, %15 : vector<8x32xf32>
      %cst_12 = arith.constant dense<0.000000e+00> : vector<8xf32>
      %17 = vector.multi_reduction <add>, %16, %cst_12 [1] : vector<8x32xf32> to vector<8xf32>
      %18 = vector.shape_cast %17 : vector<8xf32> to vector<8x1xf32>
      %cst_13 = arith.constant 3.200000e+01 : f32
      %19 = vector.broadcast %cst_13 : f32 to vector<8x1xf32>
      %20 = arith.divf %18, %19 : vector<8x1xf32>
      %21 = vector.broadcast %20 : vector<8x1xf32> to vector<8x32xf32>
      %22 = arith.subf %16, %21 : vector<8x32xf32>
      %23 = arith.mulf %22, %22 : vector<8x32xf32>
      %cst_14 = arith.constant dense<0.000000e+00> : vector<8xf32>
      %24 = vector.multi_reduction <add>, %23, %cst_14 [1] : vector<8x32xf32> to vector<8xf32>
      %25 = vector.shape_cast %24 : vector<8xf32> to vector<8x1xf32>
      %cst_15 = arith.constant 3.200000e+01 : f32
      %26 = vector.broadcast %cst_15 : f32 to vector<8x1xf32>
      %27 = arith.divf %25, %26 : vector<8x1xf32>
      %28 = vector.broadcast %20 : vector<8x1xf32> to vector<8x32xf32>
      %29 = arith.subf %16, %28 : vector<8x32xf32>
      %cst_16 = arith.constant 9.99999974E-6 : f32
      %30 = vector.broadcast %cst_16 : f32 to vector<8x1xf32>
      %31 = arith.addf %27, %30 : vector<8x1xf32>
      %32 = math.rsqrt %31 : vector<8x1xf32>
      %33 = vector.broadcast %32 : vector<8x1xf32> to vector<8x32xf32>
      %34 = arith.mulf %29, %33 : vector<8x32xf32>
      %c1 = arith.constant 1 : index
      %c0_17 = arith.constant 0 : index
      %35 = vector.load %arg5[%c1, %c0_17] : memref<3x32xf32, #tpu.memory_space<vmem>>, vector<1x32xf32>
      %36 = vector.broadcast %35 : vector<1x32xf32> to vector<8x32xf32>
      %37 = arith.mulf %34, %36 : vector<8x32xf32>
      %c2 = arith.constant 2 : index
      %c0_18 = arith.constant 0 : index
      %38 = vector.load %arg5[%c2, %c0_18] : memref<3x32xf32, #tpu.memory_space<vmem>>, vector<1x32xf32>
      %39 = vector.broadcast %38 : vector<1x32xf32> to vector<8x32xf32>
      %40 = arith.addf %37, %39 : vector<8x32xf32>
      %41 = math.tanh %40 : vector<8x32xf32>
      %c0_19 = arith.constant 0 : index
      %c0_20 = arith.constant 0 : index
      %42 = vector.load %arg3[%c0_19, %c0_20] : memref<8x8xf32, #tpu.memory_space<vmem>>, vector<8x8xf32>
      %43 = arith.truncf %41 : vector<8x32xf32> to vector<8x32xbf16>
      %c0_21 = arith.constant 0 : index
      %c0_22 = arith.constant 0 : index
      %44 = vector.load %arg6[%c0_21, %c0_22] : memref<32x256xbf16, #tpu.memory_space<vmem>>, vector<32x256xbf16>
      %cst_23 = arith.constant dense<0.000000e+00> : vector<8x256xf32>
      %45 = tpu.matmul %43, %44, %cst_23 {dimension_numbers = #tpu.dot_dimension_numbers<[1], [0], [0], [1], [0, 0, 1, 1], [], []>} : vector<8x32xbf16>, vector<32x256xbf16>, vector<8x256xf32> -> vector<8x256xf32>
      %46 = arith.truncf %42 : vector<8x8xf32> to vector<8x8xbf16>
      %c0_24 = arith.constant 0 : index
      %c0_25 = arith.constant 0 : index
      %47 = vector.load %arg7[%c0_24, %c0_25] : memref<8x256xbf16, #tpu.memory_space<vmem>>, vector<8x256xbf16>
      %cst_26 = arith.constant dense<0.000000e+00> : vector<8x256xf32>
      %48 = tpu.matmul %46, %47, %cst_26 {dimension_numbers = #tpu.dot_dimension_numbers<[1], [0], [0], [1], [0, 0, 1, 1], [], []>} : vector<8x8xbf16>, vector<8x256xbf16>, vector<8x256xf32> -> vector<8x256xf32>
      %49 = arith.addf %45, %48 : vector<8x256xf32>
      %c0_27 = arith.constant 0 : index
      %c0_28 = arith.constant 0 : index
      %50 = vector.load %arg8[%c0_27, %c0_28] : memref<1x256xf32, #tpu.memory_space<vmem>>, vector<1x256xf32>
      %51 = vector.broadcast %50 : vector<1x256xf32> to vector<8x256xf32>
      %52 = arith.addf %49, %51 : vector<8x256xf32>
      %cst_29 = arith.constant 0.000000e+00 : f32
      %53 = vector.broadcast %cst_29 : f32 to vector<8x256xf32>
      %54 = arith.maximumf %52, %53 : vector<8x256xf32>
      %55 = vector.extract_strided_slice %54 {offsets = [0, 0], sizes = [8, 128], strides = [1, 1]} : vector<8x256xf32> to vector<8x128xf32>
      %56 = arith.truncf %55 : vector<8x128xf32> to vector<8x128xbf16>
      %c0_30 = arith.constant 0 : index
      %c0_31 = arith.constant 0 : index
      %c0_32 = arith.constant 0 : index
      %57 = vector.load %arg9[%c0_30, %c0_31, %c0_32] : memref<2x128x128xbf16, #tpu.memory_space<vmem>>, vector<1x128x128xbf16>
      %58 = vector.shape_cast %57 : vector<1x128x128xbf16> to vector<128x128xbf16>
      %cst_33 = arith.constant dense<0.000000e+00> : vector<8x128xf32>
      %59 = tpu.matmul %56, %58, %cst_33 {dimension_numbers = #tpu.dot_dimension_numbers<[1], [0], [0], [1], [0, 0, 1, 1], [], []>} : vector<8x128xbf16>, vector<128x128xbf16>, vector<8x128xf32> -> vector<8x128xf32>
      %c0_34 = arith.constant 0 : index
      %c0_35 = arith.constant 0 : index
      %c0_36 = arith.constant 0 : index
      %60 = vector.load %arg10[%c0_34, %c0_35, %c0_36] : memref<2x1x128xf32, #tpu.memory_space<vmem>>, vector<1x1x128xf32>
      %61 = vector.shape_cast %60 : vector<1x1x128xf32> to vector<1x128xf32>
      %62 = vector.broadcast %61 : vector<1x128xf32> to vector<8x128xf32>
      %63 = arith.addf %59, %62 : vector<8x128xf32>
      %cst_37 = arith.constant 0.000000e+00 : f32
      %64 = vector.broadcast %cst_37 : f32 to vector<8x128xf32>
      %65 = arith.maximumf %63, %64 : vector<8x128xf32>
      %66 = vector.extract_strided_slice %54 {offsets = [0, 128], sizes = [8, 128], strides = [1, 1]} : vector<8x256xf32> to vector<8x128xf32>
      %67 = arith.truncf %66 : vector<8x128xf32> to vector<8x128xbf16>
      %c1_38 = arith.constant 1 : index
      %c0_39 = arith.constant 0 : index
      %c0_40 = arith.constant 0 : index
      %68 = vector.load %arg9[%c1_38, %c0_39, %c0_40] : memref<2x128x128xbf16, #tpu.memory_space<vmem>>, vector<1x128x128xbf16>
      %69 = vector.shape_cast %68 : vector<1x128x128xbf16> to vector<128x128xbf16>
      %cst_41 = arith.constant dense<0.000000e+00> : vector<8x128xf32>
      %70 = tpu.matmul %67, %69, %cst_41 {dimension_numbers = #tpu.dot_dimension_numbers<[1], [0], [0], [1], [0, 0, 1, 1], [], []>} : vector<8x128xbf16>, vector<128x128xbf16>, vector<8x128xf32> -> vector<8x128xf32>
      %c1_42 = arith.constant 1 : index
      %c0_43 = arith.constant 0 : index
      %c0_44 = arith.constant 0 : index
      %71 = vector.load %arg10[%c1_42, %c0_43, %c0_44] : memref<2x1x128xf32, #tpu.memory_space<vmem>>, vector<1x1x128xf32>
      %72 = vector.shape_cast %71 : vector<1x1x128xf32> to vector<1x128xf32>
      %73 = vector.broadcast %72 : vector<1x128xf32> to vector<8x128xf32>
      %74 = arith.addf %70, %73 : vector<8x128xf32>
      %cst_45 = arith.constant 0.000000e+00 : f32
      %75 = vector.broadcast %cst_45 : f32 to vector<8x128xf32>
      %76 = arith.maximumf %74, %75 : vector<8x128xf32>
      %77 = arith.truncf %65 : vector<8x128xf32> to vector<8x128xbf16>
      %c0_46 = arith.constant 0 : index
      %c0_47 = arith.constant 0 : index
      %c0_48 = arith.constant 0 : index
      %78 = vector.load %arg11[%c0_46, %c0_47, %c0_48] : memref<2x128x128xbf16, #tpu.memory_space<vmem>>, vector<1x128x128xbf16>
      %79 = vector.shape_cast %78 : vector<1x128x128xbf16> to vector<128x128xbf16>
      %cst_49 = arith.constant dense<0.000000e+00> : vector<8x128xf32>
      %80 = tpu.matmul %77, %79, %cst_49 {dimension_numbers = #tpu.dot_dimension_numbers<[1], [0], [0], [1], [0, 0, 1, 1], [], []>} : vector<8x128xbf16>, vector<128x128xbf16>, vector<8x128xf32> -> vector<8x128xf32>
      %81 = arith.truncf %76 : vector<8x128xf32> to vector<8x128xbf16>
      %c1_50 = arith.constant 1 : index
      %c0_51 = arith.constant 0 : index
      %c0_52 = arith.constant 0 : index
      %82 = vector.load %arg11[%c1_50, %c0_51, %c0_52] : memref<2x128x128xbf16, #tpu.memory_space<vmem>>, vector<1x128x128xbf16>
      %83 = vector.shape_cast %82 : vector<1x128x128xbf16> to vector<128x128xbf16>
      %cst_53 = arith.constant dense<0.000000e+00> : vector<8x128xf32>
      %84 = tpu.matmul %81, %83, %cst_53 {dimension_numbers = #tpu.dot_dimension_numbers<[1], [0], [0], [1], [0, 0, 1, 1], [], []>} : vector<8x128xbf16>, vector<128x128xbf16>, vector<8x128xf32> -> vector<8x128xf32>
      %85 = arith.addf %80, %84 : vector<8x128xf32>
      %c0_54 = arith.constant 0 : index
      %c0_55 = arith.constant 0 : index
      %86 = vector.load %arg12[%c0_54, %c0_55] : memref<1x128xf32, #tpu.memory_space<vmem>>, vector<1x128xf32>
      %87 = vector.broadcast %86 : vector<1x128xf32> to vector<8x128xf32>
      %88 = arith.addf %85, %87 : vector<8x128xf32>
      %c0_56 = arith.constant 0 : index
      %c0_57 = arith.constant 0 : index
      %89 = vector.load %arg13[%c0_56, %c0_57] : memref<8x128xf32, #tpu.memory_space<vmem>>, vector<8x128xf32>
      tpu.vector_store %arg13[%c0_56, %c0_57], %88 {strides = array<i32>} : memref<8x128xf32, #tpu.memory_space<vmem>>, vector<8x128xf32>,
    } else {
    }
    return
  }
  func.func @transform_0(%arg0: i32, %arg1: i32) -> (i32, i32) {
    %c0_i32 = arith.constant 0 : i32
    return %arg0, %arg1 : i32, i32
  }
  func.func @transform_1(%arg0: i32, %arg1: i32) -> (i32, i32) {
    %c0_i32 = arith.constant 0 : i32
    %c0_i32_0 = arith.constant 0 : i32
    return %arg0, %c0_i32 : i32, i32
  }
  func.func @transform_2(%arg0: i32, %arg1: i32) -> (i32, i32) {
    %c0_i32 = arith.constant 0 : i32
    %c0_i32_0 = arith.constant 0 : i32
    return %arg1, %c0_i32 : i32, i32
  }
  func.func @transform_3(%arg0: i32, %arg1: i32) -> (i32, i32) {
    %c0_i32 = arith.constant 0 : i32
    %c0_i32_0 = arith.constant 0 : i32
    %c0_i32_1 = arith.constant 0 : i32
    return %c0_i32, %c0_i32_0 : i32, i32
  }
  func.func @transform_4(%arg0: i32, %arg1: i32) -> (i32, i32) {
    %c0_i32 = arith.constant 0 : i32
    %c0_i32_0 = arith.constant 0 : i32
    %c0_i32_1 = arith.constant 0 : i32
    return %c0_i32, %c0_i32_0 : i32, i32
  }
  func.func @transform_5(%arg0: i32, %arg1: i32) -> (i32, i32) {
    %c0_i32 = arith.constant 0 : i32
    %c0_i32_0 = arith.constant 0 : i32
    %c0_i32_1 = arith.constant 0 : i32
    return %c0_i32, %c0_i32_0 : i32, i32
  }
  func.func @transform_6(%arg0: i32, %arg1: i32) -> (i32, i32) {
    %c0_i32 = arith.constant 0 : i32
    %c0_i32_0 = arith.constant 0 : i32
    %c0_i32_1 = arith.constant 0 : i32
    return %c0_i32, %c0_i32_0 : i32, i32
  }
  func.func @transform_7(%arg0: i32, %arg1: i32) -> (i32, i32, i32) {
    %c0_i32 = arith.constant 0 : i32
    %c0_i32_0 = arith.constant 0 : i32
    %c0_i32_1 = arith.constant 0 : i32
    %c0_i32_2 = arith.constant 0 : i32
    return %c0_i32, %c0_i32_0, %c0_i32_1 : i32, i32, i32
  }
  func.func @transform_8(%arg0: i32, %arg1: i32) -> (i32, i32, i32) {
    %c0_i32 = arith.constant 0 : i32
    %c0_i32_0 = arith.constant 0 : i32
    %c0_i32_1 = arith.constant 0 : i32
    %c0_i32_2 = arith.constant 0 : i32
    return %c0_i32, %c0_i32_0, %c0_i32_1 : i32, i32, i32
  }
  func.func @transform_9(%arg0: i32, %arg1: i32) -> (i32, i32, i32) {
    %c0_i32 = arith.constant 0 : i32
    %c0_i32_0 = arith.constant 0 : i32
    %c0_i32_1 = arith.constant 0 : i32
    %c0_i32_2 = arith.constant 0 : i32
    return %c0_i32, %c0_i32_0, %c0_i32_1 : i32, i32, i32
  }
  func.func @transform_10(%arg0: i32, %arg1: i32) -> (i32, i32) {
    %c0_i32 = arith.constant 0 : i32
    %c0_i32_0 = arith.constant 0 : i32
    %c0_i32_1 = arith.constant 0 : i32
    return %c0_i32, %c0_i32_0 : i32, i32
  }
  func.func @transform_11(%arg0: i32, %arg1: i32) -> (i32, i32) {
    %c0_i32 = arith.constant 0 : i32
    %c0_i32_0 = arith.constant 0 : i32
    return %arg0, %c0_i32 : i32, i32
  }
}

</mosaic_0001>

<llo_original>
// kernel: _critic_forward_impl.1
$region0: #{_critic_forward_impl.1}
  #allocation0 [shape = 'u32[]', space=smem, size = 0x4, offset = 0x4, fixed_abs, tag = 'smem constant byte address 0x4 - core index']
  #allocation1 [shape = 'u32[144,128]{1,0:T(1,128)}', space=vmem, size = 0x12000, scoped, tag = 'internal scratch']
  #allocation2 [shape = 'f32[8,32]{1,0:T(8,128)}', space=vmem, size = 0x1000, scoped, tag = 'scratch operand']
  %s0 = inlined_call_operand.vmem [shape: f32[8,64], index: 0, kind: input, shape index: {}]
  %s1 = inlined_call_operand.vmem [shape: f32[8,8], index: 1, kind: input, shape index: {}]
  %s2 = inlined_call_operand.vmem [shape: bf16[64,32], index: 2, kind: input, shape index: {}]
  %s3 = inlined_call_operand.hbm [shape: f32[3,32], index: 3, kind: input, shape index: {}]
  %s4 = inlined_call_operand.vmem [shape: bf16[32,256], index: 4, kind: input, shape index: {}]
  %s5 = inlined_call_operand.vmem [shape: bf16[8,256], index: 5, kind: input, shape index: {}]
  %s6 = inlined_call_operand.vmem [shape: f32[1,256], index: 6, kind: input, shape index: {}]
  %s7 = inlined_call_operand.hbm [shape: bf16[2,128,128], index: 7, kind: input, shape index: {}]
  %s8 = inlined_call_operand.hbm [shape: f32[2,1,128], index: 8, kind: input, shape index: {}]
  %s9 = inlined_call_operand.hbm [shape: bf16[2,128,128], index: 9, kind: input, shape index: {}]
  %s10 = inlined_call_operand.hbm [shape: f32[1,128], index: 10, kind: input, shape index: {}]
  %s11 = inlined_call_operand.vmem [shape: f32[8,128], index: 11, kind: output, shape index: {}]
  %s12 = sld [smem:[#allocation0]]
  $region86: #{_critic_forward_impl.1} parent=0
    _
  %s14 = ssub.s32 1, %s12
  %s15 = scalar_select 0, %s14, %s12
  $region1: #{_critic_forward_impl.1} parent=0
    #allocation3 [shape = 'u8[2048]{0}', space=vmem, size = 0x800, scoped, tag = 'input window, operand 3, single buffered']
    #allocation4 [shape = 's32[1]{0}', space=sflag, size = 0x4, scoped, tag = 'scoped memory for _critic_forward_impl.1']
    #allocation5 [shape = 'u8[65536]{0}', space=vmem, size = 0x10000, scoped, tag = 'input window, operand 7, single buffered']
    #allocation6 [shape = 's32[1]{0}', space=sflag, size = 0x4, scoped, tag = 'scoped memory for _critic_forward_impl.1']
    #allocation7 [shape = 'u8[1024]{0}', space=vmem, size = 0x400, scoped, tag = 'input window, operand 8, single buffered']
    #allocation8 [shape = 'u8[65536]{0}', space=vmem, size = 0x10000, scoped, tag = 'input window, operand 9, single buffered']
    #allocation9 [shape = 's32[1]{0}', space=sflag, size = 0x4, scoped, tag = 'scoped memory for _critic_forward_impl.1']
    #allocation10 [shape = 'u8[512]{0}', space=vmem, size = 0x400, scoped, tag = 'input window, operand 10, single buffered']
    %16 = vsyncpa [#allocation4], 0
    %17 = vsyncpa [#allocation6], 0
    %18 = vsyncpa [#allocation9], 0
    // Predicated region
    $region2: #{_critic_forward_impl.1} parent=1 // pred_check
      _
    $region3: #{_critic_forward_impl.1} parent=1 // pred_check_branch
      %20 = sbr.rel (0) target = $region5
    $region4: #{_critic_forward_impl.1} parent=1 // pred_region
      _
    $region5: #{_critic_forward_impl.1} parent=1 // pred_fallthru
      _
    // Predicated region
    $region6: #{_critic_forward_impl.1} parent=1 // pred_check
      _
    $region7: #{_critic_forward_impl.1} parent=1 // pred_check_branch
      %22 = sbr.rel (0) target = $region9
    $region8: #{_critic_forward_impl.1} parent=1 // pred_region
      _
    $region9: #{_critic_forward_impl.1} parent=1 // pred_fallthru
      _
    // Predicated region
    $region10: #{_critic_forward_impl.1} parent=1 // pred_check
      _
    $region11: #{_critic_forward_impl.1} parent=1 // pred_check_branch
      %24 = sbr.rel (0) target = $region13
    $region12: #{_critic_forward_impl.1} parent=1 // pred_region
      _
    $region13: #{_critic_forward_impl.1} parent=1 // pred_fallthru
      _
    // Predicated region
    $region14: #{_critic_forward_impl.1} parent=1 // pred_check
      _
    $region15: #{_critic_forward_impl.1} parent=1 // pred_check_branch
      %26 = sbr.rel (0) target = $region17
    $region16: #{_critic_forward_impl.1} parent=1 // pred_region
      %s28 = ssub.s32 64, 64
      %29 = vsyncadd [#allocation4], %s28
      %s31 = sshll.u32 [#allocation3], 4
      %s32 = int_to_ptr.vmem [resolvable:$true] %s31
      %34 = dma.hbm_to_vmem [thread:$0]  %s3, 64, %s32, [#allocation4]
    $region17: #{_critic_forward_impl.1} parent=1 // pred_fallthru
      _
    // Predicated region
    $region18: #{_critic_forward_impl.1} parent=1 // pred_check
      _
    $region19: #{_critic_forward_impl.1} parent=1 // pred_check_branch
      %36 = sbr.rel (0) target = $region21
    $region20: #{_critic_forward_impl.1} parent=1 // pred_region
      _
    $region21: #{_critic_forward_impl.1} parent=1 // pred_fallthru
      _
    // Predicated region
    $region22: #{_critic_forward_impl.1} parent=1 // pred_check
      _
    $region23: #{_critic_forward_impl.1} parent=1 // pred_check_branch
      %38 = sbr.rel (0) target = $region25
    $region24: #{_critic_forward_impl.1} parent=1 // pred_region
      _
    $region25: #{_critic_forward_impl.1} parent=1 // pred_fallthru
      _
    // Predicated region
    $region26: #{_critic_forward_impl.1} parent=1 // pred_check
      _
    $region27: #{_critic_forward_impl.1} parent=1 // pred_check_branch
      %40 = sbr.rel (0) target = $region29
    $region28: #{_critic_forward_impl.1} parent=1 // pred_region
      _
    $region29: #{_critic_forward_impl.1} parent=1 // pred_fallthru
      _
    // Predicated region
    $region30: #{_critic_forward_impl.1} parent=1 // pred_check
      _
    $region31: #{_critic_forward_impl.1} parent=1 // pred_check_branch
      %42 = sbr.rel (0) target = $region33
    $region32: #{_critic_forward_impl.1} parent=1 // pred_region
      %s44 = ssub.s32 2048, 2048
      %45 = vsyncadd [#allocation6], %s44
      %s46 = sshll.u32 [#allocation5], 4
      %s47 = int_to_ptr.vmem [resolvable:$true] %s46
      %52 = dma.hbm_to_vmem [thread:$0]  %s7, 2048, %s47, [#allocation6], 64, 64, 4
    $region33: #{_critic_forward_impl.1} parent=1 // pred_fallthru
      _
    // Predicated region
    $region34: #{_critic_forward_impl.1} parent=1 // pred_check
      _
    $region35: #{_critic_forward_impl.1} parent=1 // pred_check_branch
      %54 = sbr.rel (0) target = $region37
    $region36: #{_critic_forward_impl.1} parent=1 // pred_region
      %s56 = ssub.s32 32, 32
      %57 = vsyncadd [#allocation6], %s56
      %s58 = sshll.u32 [#allocation7], 4
      %s59 = int_to_ptr.vmem [resolvable:$true] %s58
      %64 = dma.hbm_to_vmem [thread:$0]  %s8, 32, %s59, [#allocation6], 16, 16, 1
    $region37: #{_critic_forward_impl.1} parent=1 // pred_fallthru
      _
    // Predicated region
    $region38: #{_critic_forward_impl.1} parent=1 // pred_check
      _
    $region39: #{_critic_forward_impl.1} parent=1 // pred_check_branch
      %66 = sbr.rel (0) target = $region41
    $region40: #{_critic_forward_impl.1} parent=1 // pred_region
      %s68 = ssub.s32 2048, 2048
      %69 = vsyncadd [#allocation9], %s68
      %s70 = sshll.u32 [#allocation8], 4
      %s71 = int_to_ptr.vmem [resolvable:$true] %s70
      %76 = dma.hbm_to_vmem [thread:$0]  %s9, 2048, %s71, [#allocation9], 64, 64, 4
    $region41: #{_critic_forward_impl.1} parent=1 // pred_fallthru
      _
    // Predicated region
    $region42: #{_critic_forward_impl.1} parent=1 // pred_check
      _
    $region43: #{_critic_forward_impl.1} parent=1 // pred_check_branch
      %78 = sbr.rel (0) target = $region45
    $region44: #{_critic_forward_impl.1} parent=1 // pred_region
      %s80 = ssub.s32 16, 16
      %81 = vsyncadd [#allocation9], %s80
      %s83 = sshll.u32 [#allocation10], 4
      %s84 = int_to_ptr.vmem [resolvable:$true] %s83
      %86 = dma.hbm_to_vmem [thread:$0]  %s10, 16, %s84, [#allocation9]
    $region45: #{_critic_forward_impl.1} parent=1 // pred_fallthru
      _
    // Predicated region
    $region46: #{_critic_forward_impl.1} parent=1 // pred_check
      _
    $region47: #{_critic_forward_impl.1} parent=1 // pred_check_branch
      %88 = sbr.rel (0) target = $region49
    $region48: #{_critic_forward_impl.1} parent=1 // pred_region
      %89 = dma.done [#allocation4], 64
    $region49: #{_critic_forward_impl.1} parent=1 // pred_fallthru
      _
    // Predicated region
    $region50: #{_critic_forward_impl.1} parent=1 // pred_check
      _
    $region51: #{_critic_forward_impl.1} parent=1 // pred_check_branch
      %91 = sbr.rel (0) target = $region53
    $region52: #{_critic_forward_impl.1} parent=1 // pred_region
      %92 = dma.done [#allocation6], 2048
    $region53: #{_critic_forward_impl.1} parent=1 // pred_fallthru
      _
    // Predicated region
    $region54: #{_critic_forward_impl.1} parent=1 // pred_check
      _
    $region55: #{_critic_forward_impl.1} parent=1 // pred_check_branch
      %94 = sbr.rel (0) target = $region57
    $region56: #{_critic_forward_impl.1} parent=1 // pred_region
      %95 = dma.done [#allocation6], 32
    $region57: #{_critic_forward_impl.1} parent=1 // pred_fallthru
      _
    // Predicated region
    $region58: #{_critic_forward_impl.1} parent=1 // pred_check
      _
    $region59: #{_critic_forward_impl.1} parent=1 // pred_check_branch
      %97 = sbr.rel (0) target = $region61
    $region60: #{_critic_forward_impl.1} parent=1 // pred_region
      %98 = dma.done [#allocation9], 2048
    $region61: #{_critic_forward_impl.1} parent=1 // pred_fallthru
      _
    // Predicated region
    $region62: #{_critic_forward_impl.1} parent=1 // pred_check
      _
    $region63: #{_critic_forward_impl.1} parent=1 // pred_check_branch
      %100 = sbr.rel (0) target = $region65
    $region64: #{_critic_forward_impl.1} parent=1 // pred_region
      %101 = dma.done [#allocation9], 16
    $region65: #{_critic_forward_impl.1} parent=1 // pred_fallthru
      _
    %v103 = vld [vmem:[%s0] sm:$0xff]
    %v104 = vpack.c.bf16 %v103, %v103
    %v105 = vld [vmem:[%s2] sm:$0xf]
    %v106 = vld [vmem:[%s2 + $0x4] sm:$0xf]
    %v107 = vld [vmem:[%s2 + $0x8] sm:$0xf]
    %v108 = vld [vmem:[%s2 + $0xc] sm:$0xf]
    %v109 = vld [vmem:[%s2 + $0x10] sm:$0xf]
    %v110 = vld [vmem:[%s2 + $0x14] sm:$0xf]
    %v111 = vld [vmem:[%s2 + $0x18] sm:$0xf]
    %v112 = vld [vmem:[%s2 + $0x1c] sm:$0xf]
    %v121 = vunpack.c.l.b16 %v105
    %v122 = vunpack.c.l.b16 %v106
    %v123 = vunpack.c.l.b16 %v107
    %v124 = vunpack.c.l.b16 %v108
    %v125 = vunpack.c.l.b16 %v109
    %v126 = vunpack.c.l.b16 %v110
    %v127 = vunpack.c.l.b16 %v111
    %v128 = vunpack.c.l.b16 %v112
    %v129 = vpack.c.b16 %v122, %v121
    %v130 = vpack.c.b16 %v124, %v123
    %v131 = vpack.c.b16 %v126, %v125
    %v132 = vpack.c.b16 %v128, %v127
    %vm137 = vcmask 523264
    %v139 = vsel %vm137, %v104, 0
    %141 = vmatprep.subr.bf16.mxu0 0
    %142 = vmatpush1.bf16.msra.mxu0 %v129
    %143 = vmatprep.subr.bf16.mxu0 0
    %144 = vmatpush1.bf16.msra.mxu0 %v130
    %145 = vmatprep.subr.bf16.mxu0 0
    %146 = vmatpush1.bf16.msra.mxu0 %v131
    %147 = vmatprep.subr.bf16.mxu0 0
    %148 = vmatpush1.bf16.msra.mxu0 %v132
    %149 = vmatprep.subr.bf16.mxu0 0
    %150 = vmatpush1.bf16.msra.mxu0 0
    %151 = vmatprep.subr.bf16.mxu0 0
    %152 = vmatpush1.bf16.msra.mxu0 0
    %153 = vmatprep.subr.bf16.mxu0 0
    %154 = vmatpush1.bf16.msra.mxu0 0
    %155 = vmatprep.subr.bf16.mxu0 0
    %156 = vmatpush1.bf16.msra.mxu0 0
    %157 = vmatprep.subr.bf16.mxu0 0
    %158 = vmatpush1.bf16.msra.mxu0 0
    %159 = vmatprep.subr.bf16.mxu0 0
    %160 = vmatpush1.bf16.msra.mxu0 0
    %161 = vmatprep.subr.bf16.mxu0 0
    %162 = vmatpush1.bf16.msra.mxu0 0
    %163 = vmatprep.subr.bf16.mxu0 0
    %164 = vmatpush1.bf16.msra.mxu0 0
    %165 = vmatprep.subr.bf16.mxu0 0
    %166 = vmatpush1.bf16.msra.mxu0 0
    %167 = vmatprep.subr.bf16.mxu0 0
    %168 = vmatpush1.bf16.msra.mxu0 0
    %169 = vmatprep.subr.bf16.mxu0 0
    %170 = vmatpush1.bf16.msra.mxu0 0
    %171 = vmatprep.subr.bf16.mxu0 0
    %172 = vmatpush1.bf16.msra.mxu0 0
    %173 = vmatprep.mubr.bf16.mxu0 0
    %174 = vmatmul.mubr.bf16.gmra.mrb[0].mxu0 %v139
    %v175 = vpop.f32.mrb[0].mxu0
    %v176 = vadd.f32 0.0, %v175
    %v177 = vpop.f32.mrb[0].mxu0
    %v178 = vpop.f32.mrb[0].mxu0
    %v179 = vpop.f32.mrb[0].mxu0
    %180 = vdwg.mxu0
    %p181 = scmp.eq.s32.totalorder 0, 0
    // Predicated region
    $region66: #{_critic_forward_impl.1} parent=1 // pred_check
      %p182 = pneg %p181
    $region67: #{_critic_forward_impl.1} parent=1 // pred_check_branch
      %184 = sbr.rel (%p182) target = $region69
    $region68: #{_critic_forward_impl.1} parent=1 // pred_region
      %vm185 = vcmask 261120
      %186 = vst.msk [vmem:[#allocation2] sm:$0xff] %vm185, %v176
    $region69: #{_critic_forward_impl.1} parent=1 // pred_fallthru
      _
    %p187 = scmp.gt.s32.totalorder 0, 0
    // Predicated region
    $region70: #{_critic_forward_impl.1} parent=1 // pred_check
      %p188 = pneg %p187
    $region71: #{_critic_forward_impl.1} parent=1 // pred_check_branch
      %190 = sbr.rel (%p188) target = $region73
    $region72: #{_critic_forward_impl.1} parent=1 // pred_region
      %v191 = vld [vmem:[#allocation2] sm:$0xff]
      %v192 = vadd.f32 %v191, %v176
      %vm193 = vcmask 261120
      %194 = vst.msk [vmem:[#allocation2] sm:$0xff] %vm193, %v192
    $region73: #{_critic_forward_impl.1} parent=1 // pred_fallthru
      _
    // Predicated region
    $region74: #{_critic_forward_impl.1} parent=1 // pred_check
      %p195 = pneg %p181
    $region75: #{_critic_forward_impl.1} parent=1 // pred_check_branch
      %197 = sbr.rel (%p195) target = $region77
    $region76: #{_critic_forward_impl.1} parent=1 // pred_region
      %v198 = vld [vmem:[#allocation2] sm:$0xff]
      %v199 = vld [vmem:[#allocation3] sm:$0x1]
      %v200 = vlaneseq
      %v201 = vshrl.u32 %v200, 7
      %v202 = vsub.s32 0, %v201
      %v203 = vrot.slane %v199, %v202
      %v204 = vadd.f32 %v198, %v203
      %vm205 = vcmask 261120
      %v206 = vsel %vm205, %v204, 0.0
      %207 = vadd.xlane.f32.xlu0 %v206
      %v208 = vpop.xlane.xlu0 %207
      %v209 = vrcp.pop 32.0
      %v210 = vmul.f32 %v208, %v209
      %v211 = vsub.f32 %v204, %v210
      %v212 = vmul.f32 %v211, %v211
      %v213 = vsel %vm205, %v212, 0.0
      %214 = vadd.xlane.f32.xlu0 %v213
      %v215 = vpop.xlane.xlu0 %214
      %v216 = vmul.f32 %v215, %v209
      %v217 = vadd.f32 %v216, 1e-05
      %v218 = vrsqrt.pop %v217
      %v219 = vmul.f32 %v211, %v218
      %v220 = vld [vmem:[#allocation3 + $0x1] sm:$0x1]
      %v221 = vlaneseq
      %v222 = vshrl.u32 %v221, 7
      %v223 = vsub.s32 0, %v222
      %v224 = vrot.slane %v220, %v223
      %v225 = vmul.f32 %v219, %v224
      %v226 = vld [vmem:[#allocation3 + $0x2] sm:$0x1]
      %v227 = vlaneseq
      %v228 = vshrl.u32 %v227, 7
      %v229 = vsub.s32 0, %v228
      %v230 = vrot.slane %v226, %v229
      %v231 = vadd.f32 %v225, %v230
      %v232 = vtanh.pop %v231
      %v233 = vld [vmem:[%s1] sm:$0xff]
      %v234 = vpack.c.bf16 %v232, %v232
      %v235 = vld [vmem:[%s4] sm:$0xff]
      %v236 = vld [vmem:[%s4 + $0x8] sm:$0xff]
      %v237 = vld [vmem:[%s4 + $0x10] sm:$0xff]
      %v238 = vld [vmem:[%s4 + $0x18] sm:$0xff]
      %v239 = vpack.c.bf16 %v233, %v233
      %v240 = vld [vmem:[%s5] sm:$0xff]
      %v242 = vunpack.c.l.b16 %v240
      %v243 = vunpack.c.h.b16 %v240
      %v244 = vpack.c.b16 %v242, %v242
      %v245 = vpack.c.b16 %v243, %v243
      %vm246 = vcmask 64512
      %v248 = vsel %vm246, %v239, 0
      %vm250 = vcmask 1043456
      %v252 = vsel %vm250, %v244, 0
      %v255 = vsel %vm250, %v245, 0
      %257 = vmatprep.subr.bf16.mxu0 %v255
      %258 = vmatpush1.bf16.msra.mxu0 %v252
      %259 = vmatprep.subr.bf16.mxu0 0
      %260 = vmatpush1.bf16.msra.mxu0 0
      %261 = vmatprep.subr.bf16.mxu0 0
      %262 = vmatpush1.bf16.msra.mxu0 0
      %263 = vmatprep.subr.bf16.mxu0 0
      %264 = vmatpush1.bf16.msra.mxu0 0
      %265 = vmatprep.subr.bf16.mxu0 0
      %266 = vmatpush1.bf16.msra.mxu0 0
      %267 = vmatprep.subr.bf16.mxu0 0
      %268 = vmatpush1.bf16.msra.mxu0 0
      %269 = vmatprep.subr.bf16.mxu0 0
      %270 = vmatpush1.bf16.msra.mxu0 0
      %271 = vmatprep.subr.bf16.mxu0 0
      %272 = vmatpush1.bf16.msra.mxu0 0
      %273 = vmatprep.subr.bf16.mxu0 0
      %274 = vmatpush1.bf16.msra.mxu0 0
      %275 = vmatprep.subr.bf16.mxu0 0
      %276 = vmatpush1.bf16.msra.mxu0 0
      %277 = vmatprep.subr.bf16.mxu0 0
      %278 = vmatpush1.bf16.msra.mxu0 0
      %279 = vmatprep.subr.bf16.mxu0 0
      %280 = vmatpush1.bf16.msra.mxu0 0
      %281 = vmatprep.subr.bf16.mxu0 0
      %282 = vmatpush1.bf16.msra.mxu0 0
      %283 = vmatprep.subr.bf16.mxu0 0
      %284 = vmatpush1.bf16.msra.mxu0 0
      %285 = vmatprep.subr.bf16.mxu0 0
      %286 = vmatpush1.bf16.msra.mxu0 0
      %287 = vmatprep.subr.bf16.mxu0 0
      %288 = vmatpush1.bf16.msra.mxu0 0
      %289 = vmatprep.mubr.bf16.mxu0 0
      %290 = vmatmul.mubr.bf16.gmra.mrb[0].mxu0 %v248
      %v291 = vpop.f32.mrb[0].mxu0
      %v292 = vadd.f32 0.0, %v291
      %v293 = vpop.f32.mrb[0].mxu0
      %v294 = vadd.f32 0.0, %v293
      %v295 = vpop.f32.mrb[0].mxu0
      %v296 = vpop.f32.mrb[0].mxu0
      %297 = vdwg.mxu0
      %v302 = vunpack.c.l.b16 %v235
      %v303 = vunpack.c.h.b16 %v235
      %v304 = vunpack.c.l.b16 %v236
      %v305 = vunpack.c.h.b16 %v236
      %v306 = vunpack.c.l.b16 %v237
      %v307 = vunpack.c.h.b16 %v237
      %v308 = vunpack.c.l.b16 %v238
      %v309 = vunpack.c.h.b16 %v238
      %v310 = vpack.c.b16 %v304, %v302
      %v311 = vpack.c.b16 %v305, %v303
      %v312 = vpack.c.b16 %v308, %v306
      %v313 = vpack.c.b16 %v309, %v307
      %v319 = vsel %vm205, %v234, 0
      %321 = vmatprep.subr.bf16.mxu0 %v311
      %322 = vmatpush1.bf16.msra.mxu0 %v310
      %323 = vmatprep.subr.bf16.mxu0 %v313
      %324 = vmatpush1.bf16.msra.mxu0 %v312
      %325 = vmatprep.subr.bf16.mxu0 0
      %326 = vmatpush1.bf16.msra.mxu0 0
      %327 = vmatprep.subr.bf16.mxu0 0
      %328 = vmatpush1.bf16.msra.mxu0 0
      %329 = vmatprep.subr.bf16.mxu0 0
      %330 = vmatpush1.bf16.msra.mxu0 0
      %331 = vmatprep.subr.bf16.mxu0 0
      %332 = vmatpush1.bf16.msra.mxu0 0
      %333 = vmatprep.subr.bf16.mxu0 0
      %334 = vmatpush1.bf16.msra.mxu0 0
      %335 = vmatprep.subr.bf16.mxu0 0
      %336 = vmatpush1.bf16.msra.mxu0 0
      %337 = vmatprep.subr.bf16.mxu0 0
      %338 = vmatpush1.bf16.msra.mxu0 0
      %339 = vmatprep.subr.bf16.mxu0 0
      %340 = vmatpush1.bf16.msra.mxu0 0
      %341 = vmatprep.subr.bf16.mxu0 0
      %342 = vmatpush1.bf16.msra.mxu0 0
      %343 = vmatprep.subr.bf16.mxu0 0
      %344 = vmatpush1.bf16.msra.mxu0 0
      %345 = vmatprep.subr.bf16.mxu0 0
      %346 = vmatpush1.bf16.msra.mxu0 0
      %347 = vmatprep.subr.bf16.mxu0 0
      %348 = vmatpush1.bf16.msra.mxu0 0
      %349 = vmatprep.subr.bf16.mxu0 0
      %350 = vmatpush1.bf16.msra.mxu0 0
      %351 = vmatprep.subr.bf16.mxu0 0
      %352 = vmatpush1.bf16.msra.mxu0 0
      %353 = vmatprep.mubr.bf16.mxu0 0
      %354 = vmatmul.mubr.bf16.gmra.mrb[0].mxu0 %v319
      %v355 = vpop.f32.mrb[0].mxu0
      %v356 = vadd.f32 %v292, %v355
      %v357 = vpop.f32.mrb[0].mxu0
      %v358 = vadd.f32 %v294, %v357
      %v359 = vpop.f32.mrb[0].mxu0
      %v360 = vpop.f32.mrb[0].mxu0
      %361 = vdwg.mxu0
      %v362 = vld [vmem:[%s6] sm:$0x3]
      %v364 = vlaneseq
      %v365 = vshrl.u32 %v364, 7
      %v366 = vsub.s32 0, %v365
      %v367 = vrot.slane %v362, %v366
      %v368 = vlaneseq
      %v369 = vshrl.u32 %v368, 7
      %v370 = vsub.s32 1, %v369
      %v371 = vrot.slane %v362, %v370
      %v374 = vadd.f32 %v356, %v367
      %v375 = vadd.f32 %v358, %v371
      %v376 = vmax.f32 %v374, 0.0
      %v377 = vmax.f32 %v375, 0.0
      %v378 = vpack.c.bf16 %v376, %v376
      %v379 = vld [vmem:[#allocation5] sm:$0xf]
      %v380 = vld [vmem:[#allocation5 + $0x4] sm:$0xf]
      %v381 = vld [vmem:[#allocation5 + $0x8] sm:$0xf]
      %v382 = vld [vmem:[#allocation5 + $0xc] sm:$0xf]
      %v383 = vld [vmem:[#allocation5 + $0x10] sm:$0xf]
      %v384 = vld [vmem:[#allocation5 + $0x14] sm:$0xf]
      %v385 = vld [vmem:[#allocation5 + $0x18] sm:$0xf]
      %v386 = vld [vmem:[#allocation5 + $0x1c] sm:$0xf]
      %v387 = vld [vmem:[#allocation5 + $0x20] sm:$0xf]
      %v388 = vld [vmem:[#allocation5 + $0x24] sm:$0xf]
      %v389 = vld [vmem:[#allocation5 + $0x28] sm:$0xf]
      %v390 = vld [vmem:[#allocation5 + $0x2c] sm:$0xf]
      %v391 = vld [vmem:[#allocation5 + $0x30] sm:$0xf]
      %v392 = vld [vmem:[#allocation5 + $0x34] sm:$0xf]
      %v393 = vld [vmem:[#allocation5 + $0x38] sm:$0xf]
      %v394 = vld [vmem:[#allocation5 + $0x3c] sm:$0xf]
      %v395 = vld [vmem:[#allocation7] sm:$0x1]
      %v397 = vlaneseq
      %v398 = vshrl.u32 %v397, 7
      %v399 = vsub.s32 0, %v398
      %v400 = vrot.slane %v395, %v399
      %v418 = vunpack.c.l.b16 %v379
      %v419 = vunpack.c.l.b16 %v380
      %v420 = vunpack.c.l.b16 %v381
      %v421 = vunpack.c.l.b16 %v382
      %v422 = vunpack.c.l.b16 %v383
      %v423 = vunpack.c.l.b16 %v384
      %v424 = vunpack.c.l.b16 %v385
      %v425 = vunpack.c.l.b16 %v386
      %v426 = vunpack.c.l.b16 %v387
      %v427 = vunpack.c.l.b16 %v388
      %v428 = vunpack.c.l.b16 %v389
      %v429 = vunpack.c.l.b16 %v390
      %v430 = vunpack.c.l.b16 %v391
      %v431 = vunpack.c.l.b16 %v392
      %v432 = vunpack.c.l.b16 %v393
      %v433 = vunpack.c.l.b16 %v394
      %v434 = vpack.c.b16 %v419, %v418
      %v435 = vpack.c.b16 %v421, %v420
      %v436 = vpack.c.b16 %v423, %v422
      %v437 = vpack.c.b16 %v425, %v424
      %v438 = vpack.c.b16 %v427, %v426
      %v439 = vpack.c.b16 %v429, %v428
      %v440 = vpack.c.b16 %v431, %v430
      %v441 = vpack.c.b16 %v433, %v432
      %450 = vmatprep.subr.bf16.mxu0 0
      %451 = vmatpush1.bf16.msra.mxu0 %v434
      %452 = vmatprep.subr.bf16.mxu0 0
      %453 = vmatpush1.bf16.msra.mxu0 %v435
      %454 = vmatprep.subr.bf16.mxu0 0
      %455 = vmatpush1.bf16.msra.mxu0 %v436
      %456 = vmatprep.subr.bf16.mxu0 0
      %457 = vmatpush1.bf16.msra.mxu0 %v437
      %458 = vmatprep.subr.bf16.mxu0 0
      %459 = vmatpush1.bf16.msra.mxu0 %v438
      %460 = vmatprep.subr.bf16.mxu0 0
      %461 = vmatpush1.bf16.msra.mxu0 %v439
      %462 = vmatprep.subr.bf16.mxu0 0
      %463 = vmatpush1.bf16.msra.mxu0 %v440
      %464 = vmatprep.subr.bf16.mxu0 0
      %465 = vmatpush1.bf16.msra.mxu0 %v441
      %466 = vmatprep.subr.bf16.mxu0 0
      %467 = vmatpush1.bf16.msra.mxu0 0
      %468 = vmatprep.subr.bf16.mxu0 0
      %469 = vmatpush1.bf16.msra.mxu0 0
      %470 = vmatprep.subr.bf16.mxu0 0
      %471 = vmatpush1.bf16.msra.mxu0 0
      %472 = vmatprep.subr.bf16.mxu0 0
      %473 = vmatpush1.bf16.msra.mxu0 0
      %474 = vmatprep.subr.bf16.mxu0 0
      %475 = vmatpush1.bf16.msra.mxu0 0
      %476 = vmatprep.subr.bf16.mxu0 0
      %477 = vmatpush1.bf16.msra.mxu0 0
      %478 = vmatprep.subr.bf16.mxu0 0
      %479 = vmatpush1.bf16.msra.mxu0 0
      %480 = vmatprep.subr.bf16.mxu0 0
      %481 = vmatpush1.bf16.msra.mxu0 0
      %482 = vmatprep.mubr.bf16.mxu0 0
      %483 = vmatmul.mubr.bf16.gmra.mrb[0].mxu0 %v378
      %v484 = vpop.f32.mrb[0].mxu0
      %v485 = vadd.f32 %v400, %v484
      %v486 = vpop.f32.mrb[0].mxu0
      %v487 = vpop.f32.mrb[0].mxu0
      %v488 = vpop.f32.mrb[0].mxu0
      %489 = vdwg.mxu0
      %v490 = vmax.f32 %v485, 0.0
      %v491 = vpack.c.bf16 %v377, %v377
      %s492 = scalar_lea.vmem [#allocation5], 64
      %v493 = vld [vmem:[%s492] sm:$0xf]
      %v494 = vld [vmem:[%s492 + $0x4] sm:$0xf]
      %v495 = vld [vmem:[%s492 + $0x8] sm:$0xf]
      %v496 = vld [vmem:[%s492 + $0xc] sm:$0xf]
      %v497 = vld [vmem:[%s492 + $0x10] sm:$0xf]
      %v498 = vld [vmem:[%s492 + $0x14] sm:$0xf]
      %v499 = vld [vmem:[%s492 + $0x18] sm:$0xf]
      %v500 = vld [vmem:[%s492 + $0x1c] sm:$0xf]
      %v501 = vld [vmem:[%s492 + $0x20] sm:$0xf]
      %v502 = vld [vmem:[%s492 + $0x24] sm:$0xf]
      %v503 = vld [vmem:[%s492 + $0x28] sm:$0xf]
      %v504 = vld [vmem:[%s492 + $0x2c] sm:$0xf]
      %v505 = vld [vmem:[%s492 + $0x30] sm:$0xf]
      %v506 = vld [vmem:[%s492 + $0x34] sm:$0xf]
      %v507 = vld [vmem:[%s492 + $0x38] sm:$0xf]
      %v508 = vld [vmem:[%s492 + $0x3c] sm:$0xf]
      %s509 = scalar_lea.vmem [#allocation7], 1
      %v510 = vld [vmem:[%s509] sm:$0x1]
      %v512 = vlaneseq
      %v513 = vshrl.u32 %v512, 7
      %v514 = vsub.s32 0, %v513
      %v515 = vrot.slane %v510, %v514
      %v533 = vunpack.c.l.b16 %v493
      %v534 = vunpack.c.l.b16 %v494
      %v535 = vunpack.c.l.b16 %v495
      %v536 = vunpack.c.l.b16 %v496
      %v537 = vunpack.c.l.b16 %v497
      %v538 = vunpack.c.l.b16 %v498
      %v539 = vunpack.c.l.b16 %v499
      %v540 = vunpack.c.l.b16 %v500
      %v541 = vunpack.c.l.b16 %v501
      %v542 = vunpack.c.l.b16 %v502
      %v543 = vunpack.c.l.b16 %v503
      %v544 = vunpack.c.l.b16 %v504
      %v545 = vunpack.c.l.b16 %v505
      %v546 = vunpack.c.l.b16 %v506
      %v547 = vunpack.c.l.b16 %v507
      %v548 = vunpack.c.l.b16 %v508
      %v549 = vpack.c.b16 %v534, %v533
      %v550 = vpack.c.b16 %v536, %v535
      %v551 = vpack.c.b16 %v538, %v537
      %v552 = vpack.c.b16 %v540, %v539
      %v553 = vpack.c.b16 %v542, %v541
      %v554 = vpack.c.b16 %v544, %v543
      %v555 = vpack.c.b16 %v546, %v545
      %v556 = vpack.c.b16 %v548, %v547
      %565 = vmatprep.subr.bf16.mxu0 0
      %566 = vmatpush1.bf16.msra.mxu0 %v549
      %567 = vmatprep.subr.bf16.mxu0 0
      %568 = vmatpush1.bf16.msra.mxu0 %v550
      %569 = vmatprep.subr.bf16.mxu0 0
      %570 = vmatpush1.bf16.msra.mxu0 %v551
      %571 = vmatprep.subr.bf16.mxu0 0
      %572 = vmatpush1.bf16.msra.mxu0 %v552
      %573 = vmatprep.subr.bf16.mxu0 0
      %574 = vmatpush1.bf16.msra.mxu0 %v553
      %575 = vmatprep.subr.bf16.mxu0 0
      %576 = vmatpush1.bf16.msra.mxu0 %v554
      %577 = vmatprep.subr.bf16.mxu0 0
      %578 = vmatpush1.bf16.msra.mxu0 %v555
      %579 = vmatprep.subr.bf16.mxu0 0
      %580 = vmatpush1.bf16.msra.mxu0 %v556
      %581 = vmatprep.subr.bf16.mxu0 0
      %582 = vmatpush1.bf16.msra.mxu0 0
      %583 = vmatprep.subr.bf16.mxu0 0
      %584 = vmatpush1.bf16.msra.mxu0 0
      %585 = vmatprep.subr.bf16.mxu0 0
      %586 = vmatpush1.bf16.msra.mxu0 0
      %587 = vmatprep.subr.bf16.mxu0 0
      %588 = vmatpush1.bf16.msra.mxu0 0
      %589 = vmatprep.subr.bf16.mxu0 0
      %590 = vmatpush1.bf16.msra.mxu0 0
      %591 = vmatprep.subr.bf16.mxu0 0
      %592 = vmatpush1.bf16.msra.mxu0 0
      %593 = vmatprep.subr.bf16.mxu0 0
      %594 = vmatpush1.bf16.msra.mxu0 0
      %595 = vmatprep.subr.bf16.mxu0 0
      %596 = vmatpush1.bf16.msra.mxu0 0
      %597 = vmatprep.mubr.bf16.mxu0 0
      %598 = vmatmul.mubr.bf16.gmra.mrb[0].mxu0 %v491
      %v599 = vpop.f32.mrb[0].mxu0
      %v600 = vadd.f32 %v515, %v599
      %v601 = vpop.f32.mrb[0].mxu0
      %v602 = vpop.f32.mrb[0].mxu0
      %v603 = vpop.f32.mrb[0].mxu0
      %604 = vdwg.mxu0
      %v605 = vmax.f32 %v600, 0.0
      %v606 = vpack.c.bf16 %v490, %v490
      %v607 = vld [vmem:[#allocation8] sm:$0xf]
      %v608 = vld [vmem:[#allocation8 + $0x4] sm:$0xf]
      %v609 = vld [vmem:[#allocation8 + $0x8] sm:$0xf]
      %v610 = vld [vmem:[#allocation8 + $0xc] sm:$0xf]
      %v611 = vld [vmem:[#allocation8 + $0x10] sm:$0xf]
      %v612 = vld [vmem:[#allocation8 + $0x14] sm:$0xf]
      %v613 = vld [vmem:[#allocation8 + $0x18] sm:$0xf]
      %v614 = vld [vmem:[#allocation8 + $0x1c] sm:$0xf]
      %v615 = vld [vmem:[#allocation8 + $0x20] sm:$0xf]
      %v616 = vld [vmem:[#allocation8 + $0x24] sm:$0xf]
      %v617 = vld [vmem:[#allocation8 + $0x28] sm:$0xf]
      %v618 = vld [vmem:[#allocation8 + $0x2c] sm:$0xf]
      %v619 = vld [vmem:[#allocation8 + $0x30] sm:$0xf]
      %v620 = vld [vmem:[#allocation8 + $0x34] sm:$0xf]
      %v621 = vld [vmem:[#allocation8 + $0x38] sm:$0xf]
      %v622 = vld [vmem:[#allocation8 + $0x3c] sm:$0xf]
      %v623 = vpack.c.bf16 %v605, %v605
      %s624 = scalar_lea.vmem [#allocation8], 64
      %v625 = vld [vmem:[%s624] sm:$0xf]
      %v626 = vld [vmem:[%s624 + $0x4] sm:$0xf]
      %v627 = vld [vmem:[%s624 + $0x8] sm:$0xf]
      %v628 = vld [vmem:[%s624 + $0xc] sm:$0xf]
      %v629 = vld [vmem:[%s624 + $0x10] sm:$0xf]
      %v630 = vld [vmem:[%s624 + $0x14] sm:$0xf]
      %v631 = vld [vmem:[%s624 + $0x18] sm:$0xf]
      %v632 = vld [vmem:[%s624 + $0x1c] sm:$0xf]
      %v633 = vld [vmem:[%s624 + $0x20] sm:$0xf]
      %v634 = vld [vmem:[%s624 + $0x24] sm:$0xf]
      %v635 = vld [vmem:[%s624 + $0x28] sm:$0xf]
      %v636 = vld [vmem:[%s624 + $0x2c] sm:$0xf]
      %v637 = vld [vmem:[%s624 + $0x30] sm:$0xf]
      %v638 = vld [vmem:[%s624 + $0x34] sm:$0xf]
      %v639 = vld [vmem:[%s624 + $0x38] sm:$0xf]
      %v640 = vld [vmem:[%s624 + $0x3c] sm:$0xf]
      %v657 = vunpack.c.l.b16 %v625
      %v658 = vunpack.c.l.b16 %v626
      %v659 = vunpack.c.l.b16 %v627
      %v660 = vunpack.c.l.b16 %v628
      %v661 = vunpack.c.l.b16 %v629
      %v662 = vunpack.c.l.b16 %v630
      %v663 = vunpack.c.l.b16 %v631
      %v664 = vunpack.c.l.b16 %v632
      %v665 = vunpack.c.l.b16 %v633
      %v666 = vunpack.c.l.b16 %v634
      %v667 = vunpack.c.l.b16 %v635
      %v668 = vunpack.c.l.b16 %v636
      %v669 = vunpack.c.l.b16 %v637
      %v670 = vunpack.c.l.b16 %v638
      %v671 = vunpack.c.l.b16 %v639
      %v672 = vunpack.c.l.b16 %v640
      %v673 = vpack.c.b16 %v658, %v657
      %v674 = vpack.c.b16 %v660, %v659
      %v675 = vpack.c.b16 %v662, %v661
      %v676 = vpack.c.b16 %v664, %v663
      %v677 = vpack.c.b16 %v666, %v665
      %v678 = vpack.c.b16 %v668, %v667
      %v679 = vpack.c.b16 %v670, %v669
      %v680 = vpack.c.b16 %v672, %v671
      %689 = vmatprep.subr.bf16.mxu0 0
      %690 = vmatpush1.bf16.msra.mxu0 %v673
      %691 = vmatprep.subr.bf16.mxu0 0
      %692 = vmatpush1.bf16.msra.mxu0 %v674
      %693 = vmatprep.subr.bf16.mxu0 0
      %694 = vmatpush1.bf16.msra.mxu0 %v675
      %695 = vmatprep.subr.bf16.mxu0 0
      %696 = vmatpush1.bf16.msra.mxu0 %v676
      %697 = vmatprep.subr.bf16.mxu0 0
      %698 = vmatpush1.bf16.msra.mxu0 %v677
      %699 = vmatprep.subr.bf16.mxu0 0
      %700 = vmatpush1.bf16.msra.mxu0 %v678
      %701 = vmatprep.subr.bf16.mxu0 0
      %702 = vmatpush1.bf16.msra.mxu0 %v679
      %703 = vmatprep.subr.bf16.mxu0 0
      %704 = vmatpush1.bf16.msra.mxu0 %v680
      %705 = vmatprep.subr.bf16.mxu0 0
      %706 = vmatpush1.bf16.msra.mxu0 0
      %707 = vmatprep.subr.bf16.mxu0 0
      %708 = vmatpush1.bf16.msra.mxu0 0
      %709 = vmatprep.subr.bf16.mxu0 0
      %710 = vmatpush1.bf16.msra.mxu0 0
      %711 = vmatprep.subr.bf16.mxu0 0
      %712 = vmatpush1.bf16.msra.mxu0 0
      %713 = vmatprep.subr.bf16.mxu0 0
      %714 = vmatpush1.bf16.msra.mxu0 0
      %715 = vmatprep.subr.bf16.mxu0 0
      %716 = vmatpush1.bf16.msra.mxu0 0
      %717 = vmatprep.subr.bf16.mxu0 0
      %718 = vmatpush1.bf16.msra.mxu0 0
      %719 = vmatprep.subr.bf16.mxu0 0
      %720 = vmatpush1.bf16.msra.mxu0 0
      %721 = vmatprep.mubr.bf16.mxu0 0
      %722 = vmatmul.mubr.bf16.gmra.mrb[0].mxu0 %v623
      %v723 = vpop.f32.mrb[0].mxu0
      %v724 = vadd.f32 0.0, %v723
      %v725 = vpop.f32.mrb[0].mxu0
      %v726 = vpop.f32.mrb[0].mxu0
      %v727 = vpop.f32.mrb[0].mxu0
      %728 = vdwg.mxu0
      %v745 = vunpack.c.l.b16 %v607
      %v746 = vunpack.c.l.b16 %v608
      %v747 = vunpack.c.l.b16 %v609
      %v748 = vunpack.c.l.b16 %v610
      %v749 = vunpack.c.l.b16 %v611
      %v750 = vunpack.c.l.b16 %v612
      %v751 = vunpack.c.l.b16 %v613
      %v752 = vunpack.c.l.b16 %v614
      %v753 = vunpack.c.l.b16 %v615
      %v754 = vunpack.c.l.b16 %v616
      %v755 = vunpack.c.l.b16 %v617
      %v756 = vunpack.c.l.b16 %v618
      %v757 = vunpack.c.l.b16 %v619
      %v758 = vunpack.c.l.b16 %v620
      %v759 = vunpack.c.l.b16 %v621
      %v760 = vunpack.c.l.b16 %v622
      %v761 = vpack.c.b16 %v746, %v745
      %v762 = vpack.c.b16 %v748, %v747
      %v763 = vpack.c.b16 %v750, %v749
      %v764 = vpack.c.b16 %v752, %v751
      %v765 = vpack.c.b16 %v754, %v753
      %v766 = vpack.c.b16 %v756, %v755
      %v767 = vpack.c.b16 %v758, %v757
      %v768 = vpack.c.b16 %v760, %v759
      %777 = vmatprep.subr.bf16.mxu0 0
      %778 = vmatpush1.bf16.msra.mxu0 %v761
      %779 = vmatprep.subr.bf16.mxu0 0
      %780 = vmatpush1.bf16.msra.mxu0 %v762
      %781 = vmatprep.subr.bf16.mxu0 0
      %782 = vmatpush1.bf16.msra.mxu0 %v763
      %783 = vmatprep.subr.bf16.mxu0 0
      %784 = vmatpush1.bf16.msra.mxu0 %v764
      %785 = vmatprep.subr.bf16.mxu0 0
      %786 = vmatpush1.bf16.msra.mxu0 %v765
      %787 = vmatprep.subr.bf16.mxu0 0
      %788 = vmatpush1.bf16.msra.mxu0 %v766
      %789 = vmatprep.subr.bf16.mxu0 0
      %790 = vmatpush1.bf16.msra.mxu0 %v767
      %791 = vmatprep.subr.bf16.mxu0 0
      %792 = vmatpush1.bf16.msra.mxu0 %v768
      %793 = vmatprep.subr.bf16.mxu0 0
      %794 = vmatpush1.bf16.msra.mxu0 0
      %795 = vmatprep.subr.bf16.mxu0 0
      %796 = vmatpush1.bf16.msra.mxu0 0
      %797 = vmatprep.subr.bf16.mxu0 0
      %798 = vmatpush1.bf16.msra.mxu0 0
      %799 = vmatprep.subr.bf16.mxu0 0
      %800 = vmatpush1.bf16.msra.mxu0 0
      %801 = vmatprep.subr.bf16.mxu0 0
      %802 = vmatpush1.bf16.msra.mxu0 0
      %803 = vmatprep.subr.bf16.mxu0 0
      %804 = vmatpush1.bf16.msra.mxu0 0
      %805 = vmatprep.subr.bf16.mxu0 0
      %806 = vmatpush1.bf16.msra.mxu0 0
      %807 = vmatprep.subr.bf16.mxu0 0
      %808 = vmatpush1.bf16.msra.mxu0 0
      %809 = vmatprep.mubr.bf16.mxu0 0
      %810 = vmatmul.mubr.bf16.gmra.mrb[0].mxu0 %v606
      %v811 = vpop.f32.mrb[0].mxu0
      %v812 = vadd.f32 %v724, %v811
      %v813 = vpop.f32.mrb[0].mxu0
      %v814 = vpop.f32.mrb[0].mxu0
      %v815 = vpop.f32.mrb[0].mxu0
      %816 = vdwg.mxu0
      %v817 = vld [vmem:[#allocation10] sm:$0x1]
      %v819 = vlaneseq
      %v820 = vshrl.u32 %v819, 7
      %v821 = vsub.s32 0, %v820
      %v822 = vrot.slane %v817, %v821
      %v824 = vadd.f32 %v812, %v822
      %825 = vst [vmem:[%s11] sm:$0xff] %v824
    $region77: #{_critic_forward_impl.1} parent=1 // pred_fallthru
      _
    // Predicated region
    $region78: #{_critic_forward_impl.1} parent=1 // pred_check
      _
    $region79: #{_critic_forward_impl.1} parent=1 // pred_check_branch
      %827 = sbr.rel (0) target = $region81
    $region80: #{_critic_forward_impl.1} parent=1 // pred_region
      _
    $region81: #{_critic_forward_impl.1} parent=1 // pred_fallthru
      _
    // Predicated region
    $region82: #{_critic_forward_impl.1} parent=1 // pred_check
      _
    $region83: #{_critic_forward_impl.1} parent=1 // pred_check_branch
      %829 = sbr.rel (0) target = $region85
    $region84: #{_critic_forward_impl.1} parent=1 // pred_region
      _
    $region85: #{_critic_forward_impl.1} parent=1 // pred_fallthru
      _
    %830 = vsyncpa [#allocation4], 1
    %831 = vsyncpa [#allocation6], 1
    %832 = vsyncpa [#allocation9], 1

</llo_original>
